<compile_context>
chip_gen: v7x
topology: tpu7x:2x2x1
jax: 0.10.0
libtpu: 0.0.40
codegen_flags: <defaults>
</compile_context>

<pallas_src>
import functools

import jax
import jax.numpy as jnp
from jax.experimental import pallas as pl
from jax.experimental.pallas import tpu as pltpu


# ----------------------------------------------------------------------------
# Pallas kernel: one TemporalBlock, one (batch, length-tile) grid step.
# ----------------------------------------------------------------------------
def _temporal_block_kernel(*refs, dilation, kernel_size, tl, pad, off, num_lt,
                           has_downsample):
    """Refs (in order):
         x_ref  : (Cin, TL)        bf16  current unpadded input tile
         w1_ref : (K, Cout, Cin)   bf16
         b1_ref : (Cout, 1)        f32
         w2_ref : (K, Cout, Cout)  bf16
         b2_ref : (Cout, 1)        f32
         [wd_ref: (Cout, Cin) bf16, bd_ref: (Cout, 1) f32]  only if downsample
         o_ref  : (Cout, TL)       bf16 or f32
         x_scr  : (Cin,  off+TL)   bf16  VMEM scratch: [... halo | tile]
         h1_scr : (Cout, off+TL)   bf16  VMEM scratch: [... halo | tile]
       Scratch layout: the current tile lives at lane-aligned column offset
       `off` (a multiple of 128, >= pad); the pad-wide halo immediately
       precedes it at columns [off - pad, off).
    """
    if has_downsample:
        (x_ref, w1_ref, b1_ref, w2_ref, b2_ref, wd_ref, bd_ref,
         o_ref, x_scr, h1_scr) = refs
    else:
        (x_ref, w1_ref, b1_ref, w2_ref, b2_ref,
         o_ref, x_scr, h1_scr) = refs
        wd_ref = bd_ref = None

    lt = pl.program_id(1)
    K, d = kernel_size, dilation

    x_bf = x_ref[...]                               # (Cin, TL) bf16, lane-aligned

    if pad > 0:
        # Causal left padding handled in VMEM (no HBM pad pass): zero the halo
        # at the first length tile of every batch element.
        @pl.when(lt == 0)
        def _zero_halo():
            x_scr[:, off - pad:off] = jnp.zeros((x_scr.shape[0], pad),
                                                x_scr.dtype)
            h1_scr[:, off - pad:off] = jnp.zeros((h1_scr.shape[0], pad),
                                                 h1_scr.dtype)

        # Stage the current tile (bf16) at the lane-aligned offset: unmasked vst.
        x_scr[:, off:off + tl] = x_bf

    # --- conv1 (dilated causal) + chomp + bias + ReLU ------------------------
    # K shifted (Cout,Cin)@(Cin,TL) MXU matmuls, bf16 operands, f32 accumulate.
    # Tap k reads input shifted left by (K-1-k)*d; tap K-1 is the live tile.
    acc1 = jnp.dot(w1_ref[K - 1], x_bf, preferred_element_type=jnp.float32)
    for k in range(K - 1):                          # static unroll, K small
        s = off - (K - 1 - k) * d                   # static slice start
        acc1 = acc1 + jnp.dot(w1_ref[k], x_scr[:, s:s + tl],
                              preferred_element_type=jnp.float32)
    h1 = jnp.maximum(acc1 + b1_ref[...], 0.0)       # (Cout, TL) f32
    h1_bf = h1.astype(jnp.bfloat16)

    if pad > 0:
        h1_scr[:, off:off + tl] = h1_bf

    # --- conv2 (dilated causal) + chomp + bias + ReLU ------------------------
    acc2 = jnp.dot(w2_ref[K - 1], h1_bf, preferred_element_type=jnp.float32)
    for k in range(K - 1):
        s = off - (K - 1 - k) * d
        acc2 = acc2 + jnp.dot(w2_ref[k], h1_scr[:, s:s + tl],
                              preferred_element_type=jnp.float32)
    h2 = jnp.maximum(acc2 + b2_ref[...], 0.0)       # (Cout, TL) f32

    # --- residual -------------------------------------------------------------
    if has_downsample:
        res = jnp.dot(wd_ref[...], x_bf,
                      preferred_element_type=jnp.float32) + bd_ref[...]
    else:
        res = x_bf.astype(jnp.float32)              # identity: no eye matmul

    o_ref[...] = jnp.maximum(h2 + res, 0.0).astype(o_ref.dtype)

    # Carry the halo (last `pad` staged columns) forward to the next tile.
    if pad > 0 and num_lt > 1:
        @pl.when(lt + 1 < num_lt)
        def _carry_halo():
            x_scr[:, off - pad:off] = x_scr[:, off + tl - pad:off + tl]
            h1_scr[:, off - pad:off] = h1_scr[:, off + tl - pad:off + tl]


# ----------------------------------------------------------------------------
# VMEM-aware tile selection.
# ----------------------------------------------------------------------------
def _round_up(x, m):
    return -(-x // m) * m


def _vmem_limits():
    """Returns (tile_budget_bytes, vmem_limit_bytes) from the chip's VMEM."""
    cap = 64 * 1024 * 1024                     # conservative default (v7x)
    try:
        info = pltpu.get_tpu_info()
        cap = int(getattr(info, "vmem_capacity_bytes", cap))
    except Exception:
        pass
    tile_budget = cap // 2                     # v7x: 32 MiB, v5e/v6e: 64 MiB
    vmem_limit = min(cap * 3 // 4, cap - 8 * 1024 * 1024)
    return tile_budget, int(vmem_limit)


def _choose_length_tile(L, pad, cin, cout, K, budget_bytes):
    """Returns (L_padded, TL, num_length_tiles, halo_offset)."""
    off = _round_up(pad, 128) if pad > 0 else 0

    def vmem_est(tl):
        io = 2 * (cin * 2 + cout * 4) * tl               # double-buffered io blocks
        wts = 2 * K * (cout * cin + cout * cout) * 2     # double-buffered weights
        scr = (cin + cout) * (tl + off) * 2              # persistent bf16 scratch
        live = 2 * cout * tl * 4 + (cin + 2 * cout) * tl * 2   # f32 accs + bf16 live
        return int(1.25 * (io + wts + scr + live))

    for tl in (4096, 2048, 1024, 512, 256, 128):
        if tl <= L and vmem_est(tl) <= budget_bytes:
            Lp = _round_up(L, tl)
            return Lp, tl, Lp // tl, off

    if L < 128:                    # tiny sequence: one whole-L tile
        return L, L, 1, off

    # Nothing under budget (very large channel counts): smallest aligned tile.
    Lp = _round_up(L, 128)
    return Lp, 128, Lp // 128, off


# ----------------------------------------------------------------------------
# Wrapper: one TemporalBlock via pallas_call (grid over batch x length tiles).
# ----------------------------------------------------------------------------
def temporal_block(x, p, out_dtype=jnp.bfloat16):
    B, Cin, L = x.shape
    K = p["kernel_size"]
    d = p["dilation"]
    pad = (K - 1) * d
    Cout = p["w1"].shape[1]
    has_ds = p["wd"] is not None

    budget, vmem_limit = _vmem_limits()
    Lp, TL, num_lt, off = _choose_length_tile(L, pad, Cin, Cout, K, budget)

    x = x.astype(jnp.bfloat16)
    if Lp != L:
        # Causal conv: trailing zero padding cannot affect the first L outputs.
        x = jnp.pad(x, ((0, 0), (0, 0), (0, Lp - L)))

    kernel = functools.partial(
        _temporal_block_kernel, dilation=d, kernel_size=K, tl=TL, pad=pad,
        off=off, num_lt=num_lt, has_downsample=has_ds)

    in_specs = [
        pl.BlockSpec((None, Cin, TL), lambda b, lt: (b, 0, lt)),     # x tile
        pl.BlockSpec((K, Cout, Cin), lambda b, lt: (0, 0, 0)),       # w1 bf16
        pl.BlockSpec((Cout, 1), lambda b, lt: (0, 0)),               # b1 f32
        pl.BlockSpec((K, Cout, Cout), lambda b, lt: (0, 0, 0)),      # w2 bf16
        pl.BlockSpec((Cout, 1), lambda b, lt: (0, 0)),               # b2 f32
    ]
    args = [x, p["w1"], p["b1"], p["w2"], p["b2"]]
    if has_ds:
        in_specs += [
            pl.BlockSpec((Cout, Cin), lambda b, lt: (0, 0)),         # wd bf16
            pl.BlockSpec((Cout, 1), lambda b, lt: (0, 0)),           # bd f32
        ]
        args += [p["wd"], p["bd"]]

    out = pl.pallas_call(
        kernel,
        out_shape=jax.ShapeDtypeStruct((B, Cout, Lp), out_dtype),
        grid=(B, num_lt),
        in_specs=in_specs,
        out_specs=pl.BlockSpec((None, Cout, TL), lambda b, lt: (b, 0, lt)),
        scratch_shapes=[
            pltpu.VMEM((Cin, off + TL), jnp.bfloat16),   # x:  halo | tile
            pltpu.VMEM((Cout, off + TL), jnp.bfloat16),  # h1: halo | tile
        ],
        compiler_params=pltpu.CompilerParams(
            # Length axis MUST stay innermost + "arbitrary" (halo carry).
            dimension_semantics=("parallel", "arbitrary"),
            vmem_limit_bytes=vmem_limit),
    )(*args)

    if Lp != L:
        out = out[:, :, :L]
    return out


# ----------------------------------------------------------------------------
# Parameter init (deterministic), mirroring the PyTorch module's shapes.
# weight_norm: w = g * v / ||v||, g initialised to ||v|| (per out-channel),
# so the effective weight equals v ~ N(0, 0.01).
# ----------------------------------------------------------------------------
def _weight_norm_effective(v):
    # v: (Cout, Cin, K); norm over (Cin, K) per output channel
    norm = jnp.sqrt(jnp.sum(v * v, axis=(1, 2), keepdims=True))
    g = norm                                  # weight_norm default init
    return g * v / norm                       # == v, but written faithfully


def init_tcn_params(key, num_inputs, num_channels, kernel_size):
    params = []
    in_ch = num_inputs
    for i, out_ch in enumerate(num_channels):
        k = jax.random.fold_in(key, i)
        k1, k2, k3, k4, k5, k6 = jax.random.split(k, 6)

        v1 = 0.01 * jax.random.normal(k1, (out_ch, in_ch, kernel_size),
                                      jnp.float32)
        w1 = _weight_norm_effective(v1)
        bound1 = 1.0 / jnp.sqrt(in_ch * kernel_size)
        b1 = jax.random.uniform(k2, (out_ch,), jnp.float32, -bound1, bound1)

        v2 = 0.01 * jax.random.normal(k3, (out_ch, out_ch, kernel_size),
                                      jnp.float32)
        w2 = _weight_norm_effective(v2)
        bound2 = 1.0 / jnp.sqrt(out_ch * kernel_size)
        b2 = jax.random.uniform(k4, (out_ch,), jnp.float32, -bound2, bound2)

        if in_ch != out_ch:
            wd = (0.01 * jax.random.normal(k5, (out_ch, in_ch), jnp.float32)
                  ).astype(jnp.bfloat16)
            bound_d = 1.0 / jnp.sqrt(in_ch)
            bd = jax.random.uniform(k6, (out_ch,), jnp.float32,
                                    -bound_d, bound_d).reshape(out_ch, 1)
        else:
            wd = None                          # identity residual: no matmul
            bd = None

        params.append(dict(
            # kernel layout: (K, Cout, Cin) so w[k] is an MXU-ready matrix
            w1=jnp.transpose(w1, (2, 0, 1)).astype(jnp.bfloat16),
            b1=b1.reshape(out_ch, 1),
            w2=jnp.transpose(w2, (2, 0, 1)).astype(jnp.bfloat16),
            b2=b2.reshape(out_ch, 1),
            wd=wd, bd=bd,
            dilation=2 ** i, kernel_size=kernel_size,
        ))
        in_ch = out_ch
    return params


def temporal_conv_net(x, params):
    out = x
    last = len(params) - 1
    for i, p in enumerate(params):
        # bf16 activations between blocks (HBM-bound layer); final block f32.
        out = temporal_block(
            out, p, out_dtype=jnp.float32 if i == last else jnp.bfloat16)
    return out


# ----------------------------------------------------------------------------
# Pure-JAX reference mirroring the kernel's precision (bf16 activations /
# MXU operands, f32 accumulation and elementwise math), for sanity check.
# ----------------------------------------------------------------------------
def _ref_block(x_bf, p):
    K = p["kernel_size"]
    d = p["dilation"]
    pad = (K - 1) * d
    L = x_bf.shape[-1]

    def causal_conv(inp_bf, w_bf, b_f32):
        ipad = jnp.pad(inp_bf, ((0, 0), (0, 0), (pad, 0)))
        out = None
        for k in range(K):
            t = jnp.einsum("oc,bcl->bol", w_bf[k], ipad[:, :, k * d:k * d + L],
                           preferred_element_type=jnp.float32)
            out = t if out is None else out + t
        return out + b_f32[None]

    h1 = jnp.maximum(causal_conv(x_bf, p["w1"], p["b1"]), 0.0)
    h1_bf = h1.astype(jnp.bfloat16)
    h2 = jnp.maximum(causal_conv(h1_bf, p["w2"], p["b2"]), 0.0)
    if p["wd"] is not None:
        res = jnp.einsum("oc,bcl->bol", p["wd"], x_bf,
                         preferred_element_type=jnp.float32) + p["bd"][None]
    else:
        res = x_bf.astype(jnp.float32)
    return jnp.maximum(h2 + res, 0.0)


def _ref_net(x, params):
    out = x.astype(jnp.bfloat16)
    last = len(params) - 1
    for i, p in enumerate(params):
        y = _ref_block(out, p)
        out = y if i == last else y.astype(jnp.bfloat16)
    return out


# ----------------------------------------------------------------------------
if __name__ == "__main__":
    key = jax.random.PRNGKey(0)
    kx, kp = jax.random.split(key)

    B, num_inputs, L = 2, 4, 16
    num_channels = [8, 8]          # two TemporalBlocks, dilations 1 and 2
    kernel_size = 2

    x = jax.random.normal(kx, (B, num_inputs, L), jnp.float32)
    params = init_tcn_params(kp, num_inputs, num_channels, kernel_size)

    out = temporal_conv_net(x, params)
    out = jax.block_until_ready(out)

    ref = _ref_net(x, params)
    assert out.shape == (B, num_channels[-1], L)
    assert out.dtype == jnp.float32
    err = jnp.max(jnp.abs(out - ref))
    assert jnp.allclose(out, ref, rtol=1e-2, atol=1e-2), f"max abs err {err}"

    print("KERNEL_OK")
</pallas_src>

<mosaic_0001>
module attributes {stable_mosaic.version = 11 : i64} {
  func.func @_temporal_block_kernel(%arg0: i32, %arg1: i32, %arg2: memref<1x4x16xbf16, #tpu.memory_space<vmem>>, %arg3: memref<2x8x4xbf16, #tpu.memory_space<vmem>>, %arg4: memref<8x1xf32, #tpu.memory_space<vmem>>, %arg5: memref<2x8x8xbf16, #tpu.memory_space<vmem>>, %arg6: memref<8x1xf32, #tpu.memory_space<vmem>>, %arg7: memref<8x4xbf16, #tpu.memory_space<vmem>>, %arg8: memref<8x1xf32, #tpu.memory_space<vmem>>, %arg9: memref<1x8x16xbf16, #tpu.memory_space<vmem>>, %arg10: memref<4x144xbf16, #tpu.memory_space<vmem>>, %arg11: memref<8x144xbf16, #tpu.memory_space<vmem>>) attributes {dimension_semantics = [#tpu.dimension_semantics<parallel>, #tpu.dimension_semantics<arbitrary>], iteration_bounds = array<i64: 2, 1>, scalar_prefetch = 0 : i64, scratch_operands = 2 : i64, tpu.core_type = #tpu.core_type<tc>, window_params = [{transform_indices = @transform_0, window_bounds = array<i64: 1, 4, 16>}, {pipeline_mode = #tpu.pipeline_mode<synchronous>, transform_indices = @transform_1, window_bounds = array<i64: 2, 8, 4>}, {pipeline_mode = #tpu.pipeline_mode<synchronous>, transform_indices = @transform_2, window_bounds = array<i64: 8, 1>}, {pipeline_mode = #tpu.pipeline_mode<synchronous>, transform_indices = @transform_3, window_bounds = array<i64: 2, 8, 8>}, {pipeline_mode = #tpu.pipeline_mode<synchronous>, transform_indices = @transform_4, window_bounds = array<i64: 8, 1>}, {pipeline_mode = #tpu.pipeline_mode<synchronous>, transform_indices = @transform_5, window_bounds = array<i64: 8, 4>}, {pipeline_mode = #tpu.pipeline_mode<synchronous>, transform_indices = @transform_6, window_bounds = array<i64: 8, 1>}, {transform_indices = @transform_7, window_bounds = array<i64: 1, 8, 16>}]} {
    %c0 = arith.constant 0 : index
    %c0_0 = arith.constant 0 : index
    %c0_1 = arith.constant 0 : index
    %0 = vector.load %arg2[%c0, %c0_0, %c0_1] : memref<1x4x16xbf16, #tpu.memory_space<vmem>>, vector<1x4x16xbf16>
    %1 = vector.shape_cast %0 : vector<1x4x16xbf16> to vector<4x16xbf16>
    %c0_i32 = arith.constant 0 : i32
    %2 = arith.cmpi eq, %arg1, %c0_i32 : i32
    %3 = arith.extui %2 : i1 to i32
    %c0_i32_2 = arith.constant 0 : i32
    %4 = arith.cmpi ne, %3, %c0_i32_2 : i32
    scf.if %4 {
      %cst_38 = arith.constant 0.000000e+00 : bf16
      %46 = vector.broadcast %cst_38 : bf16 to vector<4x1xbf16>
      %c0_39 = arith.constant 0 : index
      %c127_40 = arith.constant 127 : index
      %47 = vector.load %arg10[%c0_39, %c127_40] : memref<4x144xbf16, #tpu.memory_space<vmem>>, vector<4x1xbf16>
      tpu.vector_store %arg10[%c0_39, %c127_40], %46 {strides = array<i32>} : memref<4x144xbf16, #tpu.memory_space<vmem>>, vector<4x1xbf16>,
      %cst_41 = arith.constant 0.000000e+00 : bf16
      %48 = vector.broadcast %cst_41 : bf16 to vector<8x1xbf16>
      %c0_42 = arith.constant 0 : index
      %c127_43 = arith.constant 127 : index
      %49 = vector.load %arg11[%c0_42, %c127_43] : memref<8x144xbf16, #tpu.memory_space<vmem>>, vector<8x1xbf16>
      tpu.vector_store %arg11[%c0_42, %c127_43], %48 {strides = array<i32>} : memref<8x144xbf16, #tpu.memory_space<vmem>>, vector<8x1xbf16>,
    } else {
    }
    %c0_3 = arith.constant 0 : index
    %c128 = arith.constant 128 : index
    %5 = vector.load %arg10[%c0_3, %c128] : memref<4x144xbf16, #tpu.memory_space<vmem>>, vector<4x16xbf16>
    tpu.vector_store %arg10[%c0_3, %c128], %1 {strides = array<i32>} : memref<4x144xbf16, #tpu.memory_space<vmem>>, vector<4x16xbf16>,
    %c1 = arith.constant 1 : index
    %c0_4 = arith.constant 0 : index
    %c0_5 = arith.constant 0 : index
    %6 = vector.load %arg3[%c1, %c0_4, %c0_5] : memref<2x8x4xbf16, #tpu.memory_space<vmem>>, vector<1x8x4xbf16>
    %7 = vector.shape_cast %6 : vector<1x8x4xbf16> to vector<8x4xbf16>
    %cst = arith.constant dense<0.000000e+00> : vector<8x16xf32>
    %8 = tpu.matmul %7, %1, %cst {dimension_numbers = #tpu.dot_dimension_numbers<[1], [0], [0], [1], [0, 0, 1, 1], [], []>} : vector<8x4xbf16>, vector<4x16xbf16>, vector<8x16xf32> -> vector<8x16xf32>
    %c0_6 = arith.constant 0 : index
    %c0_7 = arith.constant 0 : index
    %c0_8 = arith.constant 0 : index
    %9 = vector.load %arg3[%c0_6, %c0_7, %c0_8] : memref<2x8x4xbf16, #tpu.memory_space<vmem>>, vector<1x8x4xbf16>
    %10 = vector.shape_cast %9 : vector<1x8x4xbf16> to vector<8x4xbf16>
    %c0_9 = arith.constant 0 : index
    %c127 = arith.constant 127 : index
    %11 = vector.load %arg10[%c0_9, %c127] : memref<4x144xbf16, #tpu.memory_space<vmem>>, vector<4x16xbf16>
    %cst_10 = arith.constant dense<0.000000e+00> : vector<8x16xf32>
    %12 = tpu.matmul %10, %11, %cst_10 {dimension_numbers = #tpu.dot_dimension_numbers<[1], [0], [0], [1], [0, 0, 1, 1], [], []>} : vector<8x4xbf16>, vector<4x16xbf16>, vector<8x16xf32> -> vector<8x16xf32>
    %13 = arith.addf %8, %12 : vector<8x16xf32>
    %c0_11 = arith.constant 0 : index
    %c0_12 = arith.constant 0 : index
    %14 = vector.load %arg4[%c0_11, %c0_12] : memref<8x1xf32, #tpu.memory_space<vmem>>, vector<8x1xf32>
    %15 = vector.broadcast %14 : vector<8x1xf32> to vector<8x16xf32>
    %16 = arith.addf %13, %15 : vector<8x16xf32>
    %cst_13 = arith.constant 0.000000e+00 : f32
    %17 = vector.broadcast %cst_13 : f32 to vector<8x16xf32>
    %18 = arith.maximumf %16, %17 : vector<8x16xf32>
    %19 = arith.truncf %18 : vector<8x16xf32> to vector<8x16xbf16>
    %c0_14 = arith.constant 0 : index
    %c128_15 = arith.constant 128 : index
    %20 = vector.load %arg11[%c0_14, %c128_15] : memref<8x144xbf16, #tpu.memory_space<vmem>>, vector<8x16xbf16>
    tpu.vector_store %arg11[%c0_14, %c128_15], %19 {strides = array<i32>} : memref<8x144xbf16, #tpu.memory_space<vmem>>, vector<8x16xbf16>,
    %c1_16 = arith.constant 1 : index
    %c0_17 = arith.constant 0 : index
    %c0_18 = arith.constant 0 : index
    %21 = vector.load %arg5[%c1_16, %c0_17, %c0_18] : memref<2x8x8xbf16, #tpu.memory_space<vmem>>, vector<1x8x8xbf16>
    %22 = vector.shape_cast %21 : vector<1x8x8xbf16> to vector<8x8xbf16>
    %cst_19 = arith.constant dense<0.000000e+00> : vector<8x16xf32>
    %23 = tpu.matmul %22, %19, %cst_19 {dimension_numbers = #tpu.dot_dimension_numbers<[1], [0], [0], [1], [0, 0, 1, 1], [], []>} : vector<8x8xbf16>, vector<8x16xbf16>, vector<8x16xf32> -> vector<8x16xf32>
    %c0_20 = arith.constant 0 : index
    %c0_21 = arith.constant 0 : index
    %c0_22 = arith.constant 0 : index
    %24 = vector.load %arg5[%c0_20, %c0_21, %c0_22] : memref<2x8x8xbf16, #tpu.memory_space<vmem>>, vector<1x8x8xbf16>
    %25 = vector.shape_cast %24 : vector<1x8x8xbf16> to vector<8x8xbf16>
    %c0_23 = arith.constant 0 : index
    %c127_24 = arith.constant 127 : index
    %26 = vector.load %arg11[%c0_23, %c127_24] : memref<8x144xbf16, #tpu.memory_space<vmem>>, vector<8x16xbf16>
    %cst_25 = arith.constant dense<0.000000e+00> : vector<8x16xf32>
    %27 = tpu.matmul %25, %26, %cst_25 {dimension_numbers = #tpu.dot_dimension_numbers<[1], [0], [0], [1], [0, 0, 1, 1], [], []>} : vector<8x8xbf16>, vector<8x16xbf16>, vector<8x16xf32> -> vector<8x16xf32>
    %28 = arith.addf %23, %27 : vector<8x16xf32>
    %c0_26 = arith.constant 0 : index
    %c0_27 = arith.constant 0 : index
    %29 = vector.load %arg6[%c0_26, %c0_27] : memref<8x1xf32, #tpu.memory_space<vmem>>, vector<8x1xf32>
    %30 = vector.broadcast %29 : vector<8x1xf32> to vector<8x16xf32>
    %31 = arith.addf %28, %30 : vector<8x16xf32>
    %cst_28 = arith.constant 0.000000e+00 : f32
    %32 = vector.broadcast %cst_28 : f32 to vector<8x16xf32>
    %33 = arith.maximumf %31, %32 : vector<8x16xf32>
    %c0_29 = arith.constant 0 : index
    %c0_30 = arith.constant 0 : index
    %34 = vector.load %arg7[%c0_29, %c0_30] : memref<8x4xbf16, #tpu.memory_space<vmem>>, vector<8x4xbf16>
    %cst_31 = arith.constant dense<0.000000e+00> : vector<8x16xf32>
    %35 = tpu.matmul %34, %1, %cst_31 {dimension_numbers = #tpu.dot_dimension_numbers<[1], [0], [0], [1], [0, 0, 1, 1], [], []>} : vector<8x4xbf16>, vector<4x16xbf16>, vector<8x16xf32> -> vector<8x16xf32>
    %c0_32 = arith.constant 0 : index
    %c0_33 = arith.constant 0 : index
    %36 = vector.load %arg8[%c0_32, %c0_33] : memref<8x1xf32, #tpu.memory_space<vmem>>, vector<8x1xf32>
    %37 = vector.broadcast %36 : vector<8x1xf32> to vector<8x16xf32>
    %38 = arith.addf %35, %37 : vector<8x16xf32>
    %39 = arith.addf %33, %38 : vector<8x16xf32>
    %cst_34 = arith.constant 0.000000e+00 : f32
    %40 = vector.broadcast %cst_34 : f32 to vector<8x16xf32>
    %41 = arith.maximumf %39, %40 : vector<8x16xf32>
    %42 = arith.truncf %41 : vector<8x16xf32> to vector<8x16xbf16>
    %c0_35 = arith.constant 0 : index
    %c0_36 = arith.constant 0 : index
    %c0_37 = arith.constant 0 : index
    %43 = vector.load %arg9[%c0_35, %c0_36, %c0_37] : memref<1x8x16xbf16, #tpu.memory_space<vmem>>, vector<1x8x16xbf16>
    %44 = vector.shape_cast %43 : vector<1x8x16xbf16> to vector<8x16xbf16>
    %45 = vector.shape_cast %42 : vector<8x16xbf16> to vector<1x8x16xbf16>
    tpu.vector_store %arg9[%c0_35, %c0_36, %c0_37], %45 {strides = array<i32>} : memref<1x8x16xbf16, #tpu.memory_space<vmem>>, vector<1x8x16xbf16>,
    return
  }
  func.func @transform_0(%arg0: i32, %arg1: i32) -> (i32, i32, i32) {
    %c0_i32 = arith.constant 0 : i32
    %c0_i32_0 = arith.constant 0 : i32
    return %arg0, %c0_i32, %arg1 : i32, i32, i32
  }
  func.func @transform_1(%arg0: i32, %arg1: i32) -> (i32, i32, i32) {
    %c0_i32 = arith.constant 0 : i32
    %c0_i32_0 = arith.constant 0 : i32
    %c0_i32_1 = arith.constant 0 : i32
    %c0_i32_2 = arith.constant 0 : i32
    return %c0_i32, %c0_i32_0, %c0_i32_1 : i32, i32, i32
  }
  func.func @transform_2(%arg0: i32, %arg1: i32) -> (i32, i32) {
    %c0_i32 = arith.constant 0 : i32
    %c0_i32_0 = arith.constant 0 : i32
    %c0_i32_1 = arith.constant 0 : i32
    return %c0_i32, %c0_i32_0 : i32, i32
  }
  func.func @transform_3(%arg0: i32, %arg1: i32) -> (i32, i32, i32) {
    %c0_i32 = arith.constant 0 : i32
    %c0_i32_0 = arith.constant 0 : i32
    %c0_i32_1 = arith.constant 0 : i32
    %c0_i32_2 = arith.constant 0 : i32
    return %c0_i32, %c0_i32_0, %c0_i32_1 : i32, i32, i32
  }
  func.func @transform_4(%arg0: i32, %arg1: i32) -> (i32, i32) {
    %c0_i32 = arith.constant 0 : i32
    %c0_i32_0 = arith.constant 0 : i32
    %c0_i32_1 = arith.constant 0 : i32
    return %c0_i32, %c0_i32_0 : i32, i32
  }
  func.func @transform_5(%arg0: i32, %arg1: i32) -> (i32, i32) {
    %c0_i32 = arith.constant 0 : i32
    %c0_i32_0 = arith.constant 0 : i32
    %c0_i32_1 = arith.constant 0 : i32
    return %c0_i32, %c0_i32_0 : i32, i32
  }
  func.func @transform_6(%arg0: i32, %arg1: i32) -> (i32, i32) {
    %c0_i32 = arith.constant 0 : i32
    %c0_i32_0 = arith.constant 0 : i32
    %c0_i32_1 = arith.constant 0 : i32
    return %c0_i32, %c0_i32_0 : i32, i32
  }
  func.func @transform_7(%arg0: i32, %arg1: i32) -> (i32, i32, i32) {
    %c0_i32 = arith.constant 0 : i32
    %c0_i32_0 = arith.constant 0 : i32
    return %arg0, %c0_i32, %arg1 : i32, i32, i32
  }
}

</mosaic_0001>

<llo_original>
// kernel: tpu_custom_call.1
$region0: #{tpu_custom_call.1}
  #allocation0 [shape = 'u32[]', space=smem, size = 0x4, offset = 0x4, fixed_abs, tag = 'smem constant byte address 0x4 - core index']
  #allocation1 [shape = 'u32[144,128]{1,0:T(1,128)}', space=vmem, size = 0x12000, scoped, tag = 'internal scratch']
  #allocation2 [shape = 'bf16[4,144]{1,0:T(4,128)(2,1)}', space=vmem, size = 0x800, scoped, tag = 'scratch operand']
  #allocation3 [shape = 'bf16[8,144]{1,0:T(8,128)(2,1)}', space=vmem, size = 0x1000, scoped, tag = 'scratch operand']
  %s0 = inlined_call_operand.vmem [shape: bf16[2,4,16], index: 0, kind: input, shape index: {}]
  %s1 = inlined_call_operand.vmem [shape: bf16[2,8,4], index: 1, kind: input, shape index: {}]
  %s2 = inlined_call_operand.vmem [shape: f32[8,1], index: 2, kind: input, shape index: {}]
  %s3 = inlined_call_operand.vmem [shape: bf16[2,8,8], index: 3, kind: input, shape index: {}]
  %s4 = inlined_call_operand.vmem [shape: f32[8,1], index: 4, kind: input, shape index: {}]
  %s5 = inlined_call_operand.vmem [shape: bf16[8,4], index: 5, kind: input, shape index: {}]
  %s6 = inlined_call_operand.vmem [shape: f32[8,1], index: 6, kind: input, shape index: {}]
  %s7 = inlined_call_operand.hbm [shape: bf16[2,8,16], index: 7, kind: output, shape index: {}]
  %s8 = sld [smem:[#allocation0]]
  $region65: #{tpu_custom_call.1} parent=0
    _
  %s10 = ssub.s32 1, %s8
  %s11 = scalar_select 0, %s10, %s8
  $region1: #{tpu_custom_call.1} parent=0
    #allocation4 [shape = 'u8[4096]{0}', space=vmem, size = 0x1000, scoped, tag = 'output window, operand 0']
    #allocation5 [shape = 's32[2]{0}', space=sflag, size = 0x8, scoped, tag = 'scoped memory for tpu_custom_call.1']
    %12 = vsyncpa [#allocation5], 0
    %s13 = scalar_lea.sflag [#allocation5], 1
    %14 = vsyncpa %s13, 0
    loop: start=0, step=1, limit=4
    $region2: #{tpu_custom_call.1} parent=1 // loop_pre_header
      _
    $region3: #{tpu_custom_call.1} parent=1 // loop_header
      %s16 = sphi 0, %s20
      %p17 = scmp.ge.s32.totalorder %s16, 4
      %s23 = sphi 0, %s35
      %s24 = sphi 0, %s31
      %s25 = sphi 0, %s23
      %s26 = sphi 0, %s24
      %s27 = sphi 0, %s25
      %s28 = sphi 0, %s26
      %s40 = sphi 0, %s42
      %s43 = sphi 0, %s40
      %s44 = sphi 0, %s43
      %s60 = sphi 0, %s44
      %s64 = sphi 0, %s64
      %s66 = sphi 0, %s64
      %s67 = sphi 0, %s66
      %s81 = sphi 0, %s67
      %s85 = sphi 0, %s85
      %s87 = sphi 0, %s85
      %s88 = sphi 0, %s87
      %s102 = sphi 0, %s88
      %s106 = sphi 0, %s106
      %s108 = sphi 0, %s106
      %s109 = sphi 0, %s108
      %s123 = sphi 0, %s109
      %s127 = sphi 0, %s127
      %s129 = sphi 0, %s127
      %s130 = sphi 0, %s129
      %s144 = sphi 0, %s130
      %s148 = sphi 0, %s148
      %s150 = sphi 0, %s148
      %s151 = sphi 0, %s150
      %s165 = sphi 0, %s151
      %s169 = sphi 0, %s169
      %s171 = sphi 0, %s169
      %s172 = sphi 0, %s171
      %s186 = sphi 0, %s172
      %s194 = sphi 0, %s196
      %s197 = sphi 0, %s194
      %s198 = sphi 0, %s197
      %s214 = sphi 0, %s198
    $region4: #{tpu_custom_call.1} parent=1 // loop_header_branch
      %19 = sbr.rel (%p17) target = $region8
    $region5: #{tpu_custom_call.1} parent=1 // loop_body
      %s21 = ssub.s32 %s16, 1
      %s22 = ssub.s32 %s16, 2
      %s29 = sadd.s32 1, %s24
      %p30 = scmp.ge.s32.totalorder %s29, 1
      %s31 = scalar_select %p30, 0, %s29
      %s32 = sadd.s32 1, %s23
      %s33 = scalar_select %p30, %s32, %s23
      %p34 = scmp.ge.s32.totalorder %s33, 2
      %s35 = scalar_select %p34, 0, %s33
      %s36 = ssub.s32 %s23, %s35
      %s37 = ssub.s32 %s24, %s31
      %s38 = sor.u32 %s36, %s37
      %p39 = scmp.eq.s32.totalorder %s38, 0
      %s41 = sadd.s32 %s40, 1
      %s42 = scalar_select %p39, %s40, %s41
      %p45 = pneg %p39
      %p46 = scmp.eq.s32.totalorder %s16, 1
      %p47 = por %p45, %p46
      %p48 = scmp.ne.s32.totalorder %s40, %s43
      %p49 = scmp.eq.s32.totalorder %s16, 0
      %p50 = por %p48, %p49
      %p51 = scmp.ne.s32.totalorder %s40, %s43
      %p52 = scmp.eq.s32.totalorder %s21, 1
      %p53 = por %p51, %p52
      %p54 = scmp.ne.s32.totalorder %s43, %s44
      %p55 = scmp.eq.s32.totalorder %s21, 0
      %p56 = por %p54, %p55
      %p57 = scmp.ne.s32.totalorder %s43, %s44
      %p58 = scmp.eq.s32.totalorder %s22, 1
      %p59 = por %p57, %p58
      %p61 = scmp.ne.s32.totalorder %s44, %s60
      %p62 = scmp.eq.s32.totalorder %s22, 0
      %p63 = por %p61, %p62
      %s65 = sadd.s32 %s64, 1
      %p68 = scmp.eq.s32.totalorder %s16, 1
      %p69 = scmp.ne.s32.totalorder %s64, %s66
      %p70 = scmp.eq.s32.totalorder %s16, 0
      %p71 = por %p69, %p70
      %p72 = scmp.ne.s32.totalorder %s64, %s66
      %p73 = scmp.eq.s32.totalorder %s21, 1
      %p74 = por %p72, %p73
      %p75 = scmp.ne.s32.totalorder %s66, %s67
      %p76 = scmp.eq.s32.totalorder %s21, 0
      %p77 = por %p75, %p76
      %p78 = scmp.ne.s32.totalorder %s66, %s67
      %p79 = scmp.eq.s32.totalorder %s22, 1
      %p80 = por %p78, %p79
      %p82 = scmp.ne.s32.totalorder %s67, %s81
      %p83 = scmp.eq.s32.totalorder %s22, 0
      %p84 = por %p82, %p83
      %s86 = sadd.s32 %s85, 1
      %p89 = scmp.eq.s32.totalorder %s16, 1
      %p90 = scmp.ne.s32.totalorder %s85, %s87
      %p91 = scmp.eq.s32.totalorder %s16, 0
      %p92 = por %p90, %p91
      %p93 = scmp.ne.s32.totalorder %s85, %s87
      %p94 = scmp.eq.s32.totalorder %s21, 1
      %p95 = por %p93, %p94
      %p96 = scmp.ne.s32.totalorder %s87, %s88
      %p97 = scmp.eq.s32.totalorder %s21, 0
      %p98 = por %p96, %p97
      %p99 = scmp.ne.s32.totalorder %s87, %s88
      %p100 = scmp.eq.s32.totalorder %s22, 1
      %p101 = por %p99, %p100
      %p103 = scmp.ne.s32.totalorder %s88, %s102
      %p104 = scmp.eq.s32.totalorder %s22, 0
      %p105 = por %p103, %p104
      %s107 = sadd.s32 %s106, 1
      %p110 = scmp.eq.s32.totalorder %s16, 1
      %p111 = scmp.ne.s32.totalorder %s106, %s108
      %p112 = scmp.eq.s32.totalorder %s16, 0
      %p113 = por %p111, %p112
      %p114 = scmp.ne.s32.totalorder %s106, %s108
      %p115 = scmp.eq.s32.totalorder %s21, 1
      %p116 = por %p114, %p115
      %p117 = scmp.ne.s32.totalorder %s108, %s109
      %p118 = scmp.eq.s32.totalorder %s21, 0
      %p119 = por %p117, %p118
      %p120 = scmp.ne.s32.totalorder %s108, %s109
      %p121 = scmp.eq.s32.totalorder %s22, 1
      %p122 = por %p120, %p121
      %p124 = scmp.ne.s32.totalorder %s109, %s123
      %p125 = scmp.eq.s32.totalorder %s22, 0
      %p126 = por %p124, %p125
      %s128 = sadd.s32 %s127, 1
      %p131 = scmp.eq.s32.totalorder %s16, 1
      %p132 = scmp.ne.s32.totalorder %s127, %s129
      %p133 = scmp.eq.s32.totalorder %s16, 0
      %p134 = por %p132, %p133
      %p135 = scmp.ne.s32.totalorder %s127, %s129
      %p136 = scmp.eq.s32.totalorder %s21, 1
      %p137 = por %p135, %p136
      %p138 = scmp.ne.s32.totalorder %s129, %s130
      %p139 = scmp.eq.s32.totalorder %s21, 0
      %p140 = por %p138, %p139
      %p141 = scmp.ne.s32.totalorder %s129, %s130
      %p142 = scmp.eq.s32.totalorder %s22, 1
      %p143 = por %p141, %p142
      %p145 = scmp.ne.s32.totalorder %s130, %s144
      %p146 = scmp.eq.s32.totalorder %s22, 0
      %p147 = por %p145, %p146
      %s149 = sadd.s32 %s148, 1
      %p152 = scmp.eq.s32.totalorder %s16, 1
      %p153 = scmp.ne.s32.totalorder %s148, %s150
      %p154 = scmp.eq.s32.totalorder %s16, 0
      %p155 = por %p153, %p154
      %p156 = scmp.ne.s32.totalorder %s148, %s150
      %p157 = scmp.eq.s32.totalorder %s21, 1
      %p158 = por %p156, %p157
      %p159 = scmp.ne.s32.totalorder %s150, %s151
      %p160 = scmp.eq.s32.totalorder %s21, 0
      %p161 = por %p159, %p160
      %p162 = scmp.ne.s32.totalorder %s150, %s151
      %p163 = scmp.eq.s32.totalorder %s22, 1
      %p164 = por %p162, %p163
      %p166 = scmp.ne.s32.totalorder %s151, %s165
      %p167 = scmp.eq.s32.totalorder %s22, 0
      %p168 = por %p166, %p167
      %s170 = sadd.s32 %s169, 1
      %p173 = scmp.eq.s32.totalorder %s16, 1
      %p174 = scmp.ne.s32.totalorder %s169, %s171
      %p175 = scmp.eq.s32.totalorder %s16, 0
      %p176 = por %p174, %p175
      %p177 = scmp.ne.s32.totalorder %s169, %s171
      %p178 = scmp.eq.s32.totalorder %s21, 1
      %p179 = por %p177, %p178
      %p180 = scmp.ne.s32.totalorder %s171, %s172
      %p181 = scmp.eq.s32.totalorder %s21, 0
      %p182 = por %p180, %p181
      %p183 = scmp.ne.s32.totalorder %s171, %s172
      %p184 = scmp.eq.s32.totalorder %s22, 1
      %p185 = por %p183, %p184
      %p187 = scmp.ne.s32.totalorder %s172, %s186
      %p188 = scmp.eq.s32.totalorder %s22, 0
      %p189 = por %p187, %p188
      %s190 = ssub.s32 %s23, %s35
      %s191 = ssub.s32 %s24, %s31
      %s192 = sor.u32 %s190, %s191
      %p193 = scmp.eq.s32.totalorder %s192, 0
      %s195 = sadd.s32 %s194, 1
      %s196 = scalar_select %p193, %s194, %s195
      %p199 = pneg %p193
      %p200 = scmp.eq.s32.totalorder %s16, 1
      %p201 = por %p199, %p200
      %p202 = scmp.ne.s32.totalorder %s194, %s197
      %p203 = scmp.eq.s32.totalorder %s16, 0
      %p204 = por %p202, %p203
      %p205 = scmp.ne.s32.totalorder %s194, %s197
      %p206 = scmp.eq.s32.totalorder %s21, 1
      %p207 = por %p205, %p206
      %p208 = scmp.ne.s32.totalorder %s197, %s198
      %p209 = scmp.eq.s32.totalorder %s21, 0
      %p210 = por %p208, %p209
      %p211 = scmp.ne.s32.totalorder %s197, %s198
      %p212 = scmp.eq.s32.totalorder %s22, 1
      %p213 = por %p211, %p212
      %p215 = scmp.ne.s32.totalorder %s198, %s214
      %p216 = scmp.eq.s32.totalorder %s22, 0
      %p217 = por %p215, %p216
      %p218 = scmp.le.s32.totalorder 1, %s16
      %p219 = scmp.lt.s32.totalorder %s16, 3
      %p220 = pnand %p218, %p219
      %p221 = pneg %p220
      // Predicated region
      $region9: #{tpu_custom_call.1} parent=5 // pred_check
        _
      $region10: #{tpu_custom_call.1} parent=5 // pred_check_branch
        %223 = sbr.rel (%p220) target = $region12
      $region11: #{tpu_custom_call.1} parent=5 // pred_region
        %s224 = ssub.s32 %s16, 1
        // Predicated region
        $region13: #{tpu_custom_call.1} parent=11 // pred_check
          %p225 = pneg %p77
        $region14: #{tpu_custom_call.1} parent=11 // pred_check_branch
          %227 = sbr.rel (%p225) target = $region16
        $region15: #{tpu_custom_call.1} parent=11 // pred_region
          _
        $region16: #{tpu_custom_call.1} parent=11 // pred_fallthru
          _
        // Predicated region
        $region17: #{tpu_custom_call.1} parent=11 // pred_check
          %p228 = pneg %p98
        $region18: #{tpu_custom_call.1} parent=11 // pred_check_branch
          %230 = sbr.rel (%p228) target = $region20
        $region19: #{tpu_custom_call.1} parent=11 // pred_region
          _
        $region20: #{tpu_custom_call.1} parent=11 // pred_fallthru
          _
        // Predicated region
        $region21: #{tpu_custom_call.1} parent=11 // pred_check
          %p231 = pneg %p119
        $region22: #{tpu_custom_call.1} parent=11 // pred_check_branch
          %233 = sbr.rel (%p231) target = $region24
        $region23: #{tpu_custom_call.1} parent=11 // pred_region
          _
        $region24: #{tpu_custom_call.1} parent=11 // pred_fallthru
          _
        // Predicated region
        $region25: #{tpu_custom_call.1} parent=11 // pred_check
          %p234 = pneg %p140
        $region26: #{tpu_custom_call.1} parent=11 // pred_check_branch
          %236 = sbr.rel (%p234) target = $region28
        $region27: #{tpu_custom_call.1} parent=11 // pred_region
          _
        $region28: #{tpu_custom_call.1} parent=11 // pred_fallthru
          _
        // Predicated region
        $region29: #{tpu_custom_call.1} parent=11 // pred_check
          %p237 = pneg %p161
        $region30: #{tpu_custom_call.1} parent=11 // pred_check_branch
          %239 = sbr.rel (%p237) target = $region32
        $region31: #{tpu_custom_call.1} parent=11 // pred_region
          _
        $region32: #{tpu_custom_call.1} parent=11 // pred_fallthru
          _
        // Predicated region
        $region33: #{tpu_custom_call.1} parent=11 // pred_check
          %p240 = pneg %p182
        $region34: #{tpu_custom_call.1} parent=11 // pred_check_branch
          %242 = sbr.rel (%p240) target = $region36
        $region35: #{tpu_custom_call.1} parent=11 // pred_region
          _
        $region36: #{tpu_custom_call.1} parent=11 // pred_fallthru
          _
      $region12: #{tpu_custom_call.1} parent=5 // pred_fallthru
        _
      %p243 = scmp.lt.s32.totalorder %s16, 2
      // Predicated region
      $region37: #{tpu_custom_call.1} parent=5 // pred_check
        %p244 = pneg %p243
      $region38: #{tpu_custom_call.1} parent=5 // pred_check_branch
        %246 = sbr.rel (%p244) target = $region40
      $region39: #{tpu_custom_call.1} parent=5 // pred_region
        // Predicated region
        $region41: #{tpu_custom_call.1} parent=39 // pred_check
          %p247 = pneg %p50
        $region42: #{tpu_custom_call.1} parent=39 // pred_check_branch
          %249 = sbr.rel (%p247) target = $region44
        $region43: #{tpu_custom_call.1} parent=39 // pred_region
          %p250 = scmp.lt.s32.totalorder %s23, 1
          %s251 = scalar_select %p250, %s23, 1
          %p252 = scmp.lt.s32.totalorder %s24, 0
          %s253 = scalar_select %p252, %s24, 0
          %s254 = sadd.s32 %s253, %s251
          %s255 = smul.addr %s254, 2
          %s256 = scalar_lea.vmem %s0, %s255
        $region44: #{tpu_custom_call.1} parent=39 // pred_fallthru
          _
      $region40: #{tpu_custom_call.1} parent=5 // pred_fallthru
        _
      %p257 = scmp.le.s32.totalorder 1, %s16
      %p258 = scmp.lt.s32.totalorder %s16, 3
      %p259 = pnand %p257, %p258
      %p260 = pneg %p259
      // Predicated region
      $region45: #{tpu_custom_call.1} parent=5 // pred_check
        _
      $region46: #{tpu_custom_call.1} parent=5 // pred_check_branch
        %262 = sbr.rel (%p259) target = $region48
      $region47: #{tpu_custom_call.1} parent=5 // pred_region
        %s263 = ssub.s32 %s16, 1
        %p264 = scmp.lt.s32.totalorder %s25, 1
        %s265 = scalar_select %p264, %s25, 1
        %p266 = scmp.lt.s32.totalorder %s26, 0
        %s267 = scalar_select %p266, %s26, 0
        %s268 = sadd.s32 %s267, %s265
        %s269 = smul.addr %s268, 2
        %s270 = scalar_lea.vmem %s0, %s269
        %p271 = pneg %p56
        %p272 = pneg %p53
        %p273 = pneg %p77
        %p274 = pneg %p74
        %p275 = pneg %p98
        %p276 = pneg %p95
        %p277 = pneg %p119
        %p278 = pneg %p116
        %p279 = pneg %p140
        %p280 = pneg %p137
        %p281 = pneg %p161
        %p282 = pneg %p158
        %p283 = pneg %p182
        %p284 = pneg %p179
        %p285 = pneg %p210
        %p286 = pneg %p207
        %s287 = sand.u32 %s197, 1
        %s288 = scalar_lea.sflag [#allocation5], %s287
        %s289 = sand.u32 %s197, 1
        %s290 = smul.addr %s289, 4
        %s291 = scalar_lea.vmem [#allocation4], %s290
        %p292 = scmp.lt.s32.totalorder %s25, 1
        %s293 = scalar_select %p292, %s25, 1
        %p294 = scmp.lt.s32.totalorder %s26, 0
        %s295 = scalar_select %p294, %s26, 0
        %s296 = sadd.s32 %s295, %s293
        %s297 = smul.addr %s296, 2
        %s298 = scalar_lea.vmem %s0, %s297
        %v300 = vld [vmem:[%s298] sm:$0x3]
        %p301 = scmp.eq.s32.totalorder %s26, 0
        // Predicated region
        $region49: #{tpu_custom_call.1} parent=47 // pred_check
          %p302 = pneg %p301
        $region50: #{tpu_custom_call.1} parent=47 // pred_check_branch
          %304 = sbr.rel (%p302) target = $region52
        $region51: #{tpu_custom_call.1} parent=47 // pred_region
          %vm305 = vcmask 1042424
          %306 = vst.msk [vmem:[#allocation2] sm:$0x3] %vm305, 0
          %vm307 = vcmask 1044472
          %308 = vst.msk [vmem:[#allocation3] sm:$0xf] %vm307, 0
        $region52: #{tpu_custom_call.1} parent=47 // pred_fallthru
          _
        %vm309 = vcmask 123904
        %310 = vst.msk [vmem:[#allocation2 + $0x2] sm:$0x3] %vm309, %v300
        %s311 = scalar_lea.vmem %s1, 4
        %v312 = vld [vmem:[%s311] sm:$0xf]
        %v313 = vld [vmem:[%s1] sm:$0xf]
        %v314 = vld [vmem:[#allocation2] sm:$0xf]
        %v317 = vunpack.c.l.s4 1983009808
        %v318 = vunpack.c.0.s8 %v317
        %v319 = vlaneseq
        %v320 = vshrl.u32 %v319, 7
        %v321 = vsub.s32 %v318, %v320
        %v322 = vrot.slane %v314, %v321
        %v323 = vcombine.high %v322, %v322
        %324 = vrot.lane.b32.xlu0 %v322, 1
        %v325 = vpop.permute.xlu0 %324
        %326 = vrot.lane.b32.xlu0 %v323, 1
        %v327 = vpop.permute.xlu0 %326
        %vm328 = vcmask 7168
        %v329 = vsel %vm328, %v325, %v327
        %vm330 = vcmask 31744
        %v332 = vsel %vm330, %v313, 0
        %vm334 = vcmask 1041408
        %v336 = vsel %vm334, %v329, 0
        %338 = vmatprep.subr.bf16.mxu0 0
        %339 = vmatpush1.bf16.msra.mxu0 %v336
        %340 = vmatprep.subr.bf16.mxu0 0
        %341 = vmatpush1.bf16.msra.mxu0 0
        %342 = vmatprep.subr.bf16.mxu0 0
        %343 = vmatpush1.bf16.msra.mxu0 0
        %344 = vmatprep.subr.bf16.mxu0 0
        %345 = vmatpush1.bf16.msra.mxu0 0
        %346 = vmatprep.subr.bf16.mxu0 0
        %347 = vmatpush1.bf16.msra.mxu0 0
        %348 = vmatprep.subr.bf16.mxu0 0
        %349 = vmatpush1.bf16.msra.mxu0 0
        %350 = vmatprep.subr.bf16.mxu0 0
        %351 = vmatpush1.bf16.msra.mxu0 0
        %352 = vmatprep.subr.bf16.mxu0 0
        %353 = vmatpush1.bf16.msra.mxu0 0
        %354 = vmatprep.subr.bf16.mxu0 0
        %355 = vmatpush1.bf16.msra.mxu0 0
        %356 = vmatprep.subr.bf16.mxu0 0
        %357 = vmatpush1.bf16.msra.mxu0 0
        %358 = vmatprep.subr.bf16.mxu0 0
        %359 = vmatpush1.bf16.msra.mxu0 0
        %360 = vmatprep.subr.bf16.mxu0 0
        %361 = vmatpush1.bf16.msra.mxu0 0
        %362 = vmatprep.subr.bf16.mxu0 0
        %363 = vmatpush1.bf16.msra.mxu0 0
        %364 = vmatprep.subr.bf16.mxu0 0
        %365 = vmatpush1.bf16.msra.mxu0 0
        %366 = vmatprep.subr.bf16.mxu0 0
        %367 = vmatpush1.bf16.msra.mxu0 0
        %368 = vmatprep.subr.bf16.mxu0 0
        %369 = vmatpush1.bf16.msra.mxu0 0
        %370 = vmatprep.mubr.bf16.mxu0 0
        %371 = vmatmul.mubr.bf16.gmra.mrb[0].mxu0 %v332
        %v372 = vpop.f32.mrb[0].mxu0
        %v373 = vadd.f32 0.0, %v372
        %v374 = vpop.f32.mrb[0].mxu0
        %v375 = vpop.f32.mrb[0].mxu0
        %v376 = vpop.f32.mrb[0].mxu0
        %377 = vdwg.mxu0
        %v379 = vsel %vm330, %v312, 0
        %v382 = vsel %vm334, %v300, 0
        %384 = vmatprep.subr.bf16.mxu0 0
        %385 = vmatpush1.bf16.msra.mxu0 %v382
        %386 = vmatprep.subr.bf16.mxu0 0
        %387 = vmatpush1.bf16.msra.mxu0 0
        %388 = vmatprep.subr.bf16.mxu0 0
        %389 = vmatpush1.bf16.msra.mxu0 0
        %390 = vmatprep.subr.bf16.mxu0 0
        %391 = vmatpush1.bf16.msra.mxu0 0
        %392 = vmatprep.subr.bf16.mxu0 0
        %393 = vmatpush1.bf16.msra.mxu0 0
        %394 = vmatprep.subr.bf16.mxu0 0
        %395 = vmatpush1.bf16.msra.mxu0 0
        %396 = vmatprep.subr.bf16.mxu0 0
        %397 = vmatpush1.bf16.msra.mxu0 0
        %398 = vmatprep.subr.bf16.mxu0 0
        %399 = vmatpush1.bf16.msra.mxu0 0
        %400 = vmatprep.subr.bf16.mxu0 0
        %401 = vmatpush1.bf16.msra.mxu0 0
        %402 = vmatprep.subr.bf16.mxu0 0
        %403 = vmatpush1.bf16.msra.mxu0 0
        %404 = vmatprep.subr.bf16.mxu0 0
        %405 = vmatpush1.bf16.msra.mxu0 0
        %406 = vmatprep.subr.bf16.mxu0 0
        %407 = vmatpush1.bf16.msra.mxu0 0
        %408 = vmatprep.subr.bf16.mxu0 0
        %409 = vmatpush1.bf16.msra.mxu0 0
        %410 = vmatprep.subr.bf16.mxu0 0
        %411 = vmatpush1.bf16.msra.mxu0 0
        %412 = vmatprep.subr.bf16.mxu0 0
        %413 = vmatpush1.bf16.msra.mxu0 0
        %414 = vmatprep.subr.bf16.mxu0 0
        %415 = vmatpush1.bf16.msra.mxu0 0
        %416 = vmatprep.mubr.bf16.mxu0 0
        %417 = vmatmul.mubr.bf16.gmra.mrb[0].mxu0 %v379
        %v418 = vpop.f32.mrb[0].mxu0
        %v419 = vadd.f32 %v373, %v418
        %v420 = vpop.f32.mrb[0].mxu0
        %v421 = vpop.f32.mrb[0].mxu0
        %v422 = vpop.f32.mrb[0].mxu0
        %423 = vdwg.mxu0
        %v424 = vld [vmem:[%s2] sm:$0xff]
        %426 = vset.pattern.permute.xlu0 0
        %427 = vperm.xlu0 %426, %v424
        %v428 = vpop.permute.xlu0 %427
        %v430 = vadd.f32 %v419, %v428
        %v431 = vmax.f32 %v430, 0.0
        %v432 = vpack.c.bf16 %v431, %v431
        %vm433 = vcmask 125952
        %434 = vst.msk [vmem:[#allocation3 + $0x4] sm:$0xf] %vm433, %v432
        %s435 = scalar_lea.vmem %s3, 4
        %v436 = vld [vmem:[%s435] sm:$0xf]
        %v437 = vld [vmem:[%s3] sm:$0xf]
        %v438 = vld [vmem:[#allocation3] sm:$0xff]
        %v440 = vunpack.c.l.b16 %v438
        %v441 = vunpack.c.h.b16 %v438
        %v442 = vpack.c.b16 %v440, %v440
        %v443 = vpack.c.b16 %v441, %v441
        %444 = vrot.lane.b32.xlu0 %v442, 1
        %v445 = vpop.permute.xlu0 %444
        %446 = vrot.lane.b32.xlu0 %v443, 1
        %v447 = vpop.permute.xlu0 %446
        %v448 = vsel %vm328, %v445, %v447
        %vm449 = vcmask 64512
        %v451 = vsel %vm449, %v437, 0
        %vm453 = vcmask 1043456
        %v455 = vsel %vm453, %v448, 0
        %457 = vmatprep.subr.bf16.mxu0 0
        %458 = vmatpush1.bf16.msra.mxu0 %v455
        %459 = vmatprep.subr.bf16.mxu0 0
        %460 = vmatpush1.bf16.msra.mxu0 0
        %461 = vmatprep.subr.bf16.mxu0 0
        %462 = vmatpush1.bf16.msra.mxu0 0
        %463 = vmatprep.subr.bf16.mxu0 0
        %464 = vmatpush1.bf16.msra.mxu0 0
        %465 = vmatprep.subr.bf16.mxu0 0
        %466 = vmatpush1.bf16.msra.mxu0 0
        %467 = vmatprep.subr.bf16.mxu0 0
        %468 = vmatpush1.bf16.msra.mxu0 0
        %469 = vmatprep.subr.bf16.mxu0 0
        %470 = vmatpush1.bf16.msra.mxu0 0
        %471 = vmatprep.subr.bf16.mxu0 0
        %472 = vmatpush1.bf16.msra.mxu0 0
        %473 = vmatprep.subr.bf16.mxu0 0
        %474 = vmatpush1.bf16.msra.mxu0 0
        %475 = vmatprep.subr.bf16.mxu0 0
        %476 = vmatpush1.bf16.msra.mxu0 0
        %477 = vmatprep.subr.bf16.mxu0 0
        %478 = vmatpush1.bf16.msra.mxu0 0
        %479 = vmatprep.subr.bf16.mxu0 0
        %480 = vmatpush1.bf16.msra.mxu0 0
        %481 = vmatprep.subr.bf16.mxu0 0
        %482 = vmatpush1.bf16.msra.mxu0 0
        %483 = vmatprep.subr.bf16.mxu0 0
        %484 = vmatpush1.bf16.msra.mxu0 0
        %485 = vmatprep.subr.bf16.mxu0 0
        %486 = vmatpush1.bf16.msra.mxu0 0
        %487 = vmatprep.subr.bf16.mxu0 0
        %488 = vmatpush1.bf16.msra.mxu0 0
        %489 = vmatprep.mubr.bf16.mxu0 0
        %490 = vmatmul.mubr.bf16.gmra.mrb[0].mxu0 %v451
        %v491 = vpop.f32.mrb[0].mxu0
        %v492 = vadd.f32 0.0, %v491
        %v493 = vpop.f32.mrb[0].mxu0
        %v494 = vpop.f32.mrb[0].mxu0
        %v495 = vpop.f32.mrb[0].mxu0
        %496 = vdwg.mxu0
        %v498 = vsel %vm449, %v436, 0
        %v501 = vsel %vm453, %v432, 0
        %503 = vmatprep.subr.bf16.mxu0 0
        %504 = vmatpush1.bf16.msra.mxu0 %v501
        %505 = vmatprep.subr.bf16.mxu0 0
        %506 = vmatpush1.bf16.msra.mxu0 0
        %507 = vmatprep.subr.bf16.mxu0 0
        %508 = vmatpush1.bf16.msra.mxu0 0
        %509 = vmatprep.subr.bf16.mxu0 0
        %510 = vmatpush1.bf16.msra.mxu0 0
        %511 = vmatprep.subr.bf16.mxu0 0
        %512 = vmatpush1.bf16.msra.mxu0 0
        %513 = vmatprep.subr.bf16.mxu0 0
        %514 = vmatpush1.bf16.msra.mxu0 0
        %515 = vmatprep.subr.bf16.mxu0 0
        %516 = vmatpush1.bf16.msra.mxu0 0
        %517 = vmatprep.subr.bf16.mxu0 0
        %518 = vmatpush1.bf16.msra.mxu0 0
        %519 = vmatprep.subr.bf16.mxu0 0
        %520 = vmatpush1.bf16.msra.mxu0 0
        %521 = vmatprep.subr.bf16.mxu0 0
        %522 = vmatpush1.bf16.msra.mxu0 0
        %523 = vmatprep.subr.bf16.mxu0 0
        %524 = vmatpush1.bf16.msra.mxu0 0
        %525 = vmatprep.subr.bf16.mxu0 0
        %526 = vmatpush1.bf16.msra.mxu0 0
        %527 = vmatprep.subr.bf16.mxu0 0
        %528 = vmatpush1.bf16.msra.mxu0 0
        %529 = vmatprep.subr.bf16.mxu0 0
        %530 = vmatpush1.bf16.msra.mxu0 0
        %531 = vmatprep.subr.bf16.mxu0 0
        %532 = vmatpush1.bf16.msra.mxu0 0
        %533 = vmatprep.subr.bf16.mxu0 0
        %534 = vmatpush1.bf16.msra.mxu0 0
        %535 = vmatprep.mubr.bf16.mxu0 0
        %536 = vmatmul.mubr.bf16.gmra.mrb[0].mxu0 %v498
        %v537 = vpop.f32.mrb[0].mxu0
        %v538 = vadd.f32 %v492, %v537
        %v539 = vpop.f32.mrb[0].mxu0
        %v540 = vpop.f32.mrb[0].mxu0
        %v541 = vpop.f32.mrb[0].mxu0
        %542 = vdwg.mxu0
        %v543 = vld [vmem:[%s4] sm:$0xff]
        %545 = vset.pattern.permute.xlu0 0
        %546 = vperm.xlu0 %545, %v543
        %v547 = vpop.permute.xlu0 %546
        %v549 = vadd.f32 %v538, %v547
        %v550 = vmax.f32 %v549, 0.0
        %v551 = vld [vmem:[%s5] sm:$0xf]
        %v552 = vld [vmem:[%s6] sm:$0xff]
        %554 = vset.pattern.permute.xlu0 0
        %555 = vperm.xlu0 %554, %v552
        %v556 = vpop.permute.xlu0 %555
        %v559 = vsel %vm330, %v551, 0
        %561 = vmatprep.subr.bf16.mxu0 0
        %562 = vmatpush1.bf16.msra.mxu0 %v382
        %563 = vmatprep.subr.bf16.mxu0 0
        %564 = vmatpush1.bf16.msra.mxu0 0
        %565 = vmatprep.subr.bf16.mxu0 0
        %566 = vmatpush1.bf16.msra.mxu0 0
        %567 = vmatprep.subr.bf16.mxu0 0
        %568 = vmatpush1.bf16.msra.mxu0 0
        %569 = vmatprep.subr.bf16.mxu0 0
        %570 = vmatpush1.bf16.msra.mxu0 0
        %571 = vmatprep.subr.bf16.mxu0 0
        %572 = vmatpush1.bf16.msra.mxu0 0
        %573 = vmatprep.subr.bf16.mxu0 0
        %574 = vmatpush1.bf16.msra.mxu0 0
        %575 = vmatprep.subr.bf16.mxu0 0
        %576 = vmatpush1.bf16.msra.mxu0 0
        %577 = vmatprep.subr.bf16.mxu0 0
        %578 = vmatpush1.bf16.msra.mxu0 0
        %579 = vmatprep.subr.bf16.mxu0 0
        %580 = vmatpush1.bf16.msra.mxu0 0
        %581 = vmatprep.subr.bf16.mxu0 0
        %582 = vmatpush1.bf16.msra.mxu0 0
        %583 = vmatprep.subr.bf16.mxu0 0
        %584 = vmatpush1.bf16.msra.mxu0 0
        %585 = vmatprep.subr.bf16.mxu0 0
        %586 = vmatpush1.bf16.msra.mxu0 0
        %587 = vmatprep.subr.bf16.mxu0 0
        %588 = vmatpush1.bf16.msra.mxu0 0
        %589 = vmatprep.subr.bf16.mxu0 0
        %590 = vmatpush1.bf16.msra.mxu0 0
        %591 = vmatprep.subr.bf16.mxu0 0
        %592 = vmatpush1.bf16.msra.mxu0 0
        %593 = vmatprep.mubr.bf16.mxu0 0
        %594 = vmatmul.mubr.bf16.gmra.mrb[0].mxu0 %v559
        %v595 = vpop.f32.mrb[0].mxu0
        %v596 = vadd.f32 %v556, %v595
        %v597 = vpop.f32.mrb[0].mxu0
        %v598 = vpop.f32.mrb[0].mxu0
        %v599 = vpop.f32.mrb[0].mxu0
        %600 = vdwg.mxu0
        %v601 = vadd.f32 %v550, %v596
        %v602 = vmax.f32 %v601, 0.0
        %v603 = vpack.c.bf16 %v602, %v602
        %604 = vst.msk [vmem:[%s291] sm:$0xf] %vm433, %v603
        %s605 = sand.u32 %s197, 1
        %s606 = scalar_lea.sflag [#allocation5], %s605
        %s607 = sand.u32 %s197, 1
        %s608 = smul.addr %s607, 4
        %s609 = scalar_lea.vmem [#allocation4], %s608
        // Predicated region
        $region53: #{tpu_custom_call.1} parent=47 // pred_check
          %p610 = pneg %p207
        $region54: #{tpu_custom_call.1} parent=47 // pred_check_branch
          %612 = sbr.rel (%p610) target = $region56
        $region55: #{tpu_custom_call.1} parent=47 // pred_region
          %s614 = ssub.s32 64, 64
          %615 = vsyncadd %s606, %s614
          %s616 = sadd.s32 %s26, %s25
          %s617 = smul.addr %s616, 64
          %s618 = scalar_lea.hbm %s7, %s617
          %s620 = sshll.u32 %s609, 4
          %s621 = int_to_ptr.vmem [resolvable:$true] %s620
          %623 = dma.vmem_to_hbm [thread:$0]  %s621, 64, %s618, %s606
        $region56: #{tpu_custom_call.1} parent=47 // pred_fallthru
          _
      $region48: #{tpu_custom_call.1} parent=5 // pred_fallthru
        _
      %p624 = scmp.le.s32.totalorder 2, %s16
      // Predicated region
      $region57: #{tpu_custom_call.1} parent=5 // pred_check
        %p625 = pneg %p624
      $region58: #{tpu_custom_call.1} parent=5 // pred_check_branch
        %627 = sbr.rel (%p625) target = $region60
      $region59: #{tpu_custom_call.1} parent=5 // pred_region
        %s628 = ssub.s32 %s16, 2
        // Predicated region
        $region61: #{tpu_custom_call.1} parent=59 // pred_check
          %p629 = pneg %p213
        $region62: #{tpu_custom_call.1} parent=59 // pred_check_branch
          %631 = sbr.rel (%p629) target = $region64
        $region63: #{tpu_custom_call.1} parent=59 // pred_region
          %s632 = sand.u32 %s198, 1
          %s633 = scalar_lea.sflag [#allocation5], %s632
          %s634 = sand.u32 %s198, 1
          %s635 = smul.addr %s634, 4
          %s636 = scalar_lea.vmem [#allocation4], %s635
          %637 = dma.done %s633, 64
        $region64: #{tpu_custom_call.1} parent=59 // pred_fallthru
          _
      $region60: #{tpu_custom_call.1} parent=5 // pred_fallthru
        _
    $region6: #{tpu_custom_call.1} parent=1 // loop_footer
      %s20 = sadd.s32 1, %s16
    $region7: #{tpu_custom_call.1} parent=1 // loop_footer_branch
      %15 = sbr.rel target = $region3
    $region8: #{tpu_custom_call.1} parent=1 // loop_exit
      _
    %638 = vsyncpa [#allocation5], 1
    %s639 = scalar_lea.sflag [#allocation5], 1
    %640 = vsyncpa %s639, 1

</llo_original>
